<compile_context>
chip_gen: v5e
topology: v5e:2x2
jax: 0.10.0
libtpu: 0.0.40
codegen_flags: <defaults>
</compile_context>

<pallas_src>
import math

import jax
import jax.numpy as jnp
import numpy as np
from jax import lax
from jax.experimental import pallas as pl
from jax.experimental.pallas import tpu as pltpu  # noqa: F401  (TPU backend)

# ----------------------------- configuration -------------------------------
B = 2            # batch
S = 8            # seq_len
H = 32           # hidden_size
NH = 4           # num_heads
HD = H // NH     # head_dim
BS = B * S       # folded batch*seq rows (16)
NBS = NH * BS    # head-stacked rows (64)
MAX_SEQ = 200
EPS = 1e-5
NEG_INF = -1e9

# row indices inside the packed (16,128) vector slab
(_R_LN1G, _R_LN1B, _R_TW, _R_TB, _R_BQKV,
 _R_BO, _R_LN2G, _R_LN2B, _R_B1, _R_B2) = range(10)


# ------------------------------- kernel ------------------------------------
def mhta_kernel(data_ref, vecs_ref, wslab_ref, w2_ref, relw_ref, masks_ref, o_ref):
    data = data_ref[...]                         # (BS, 2H): [x | time broadcast]
    x = data[:, :H]                              # original input (residual 1)
    t_b = data[:, H:2 * H]                       # time value broadcast over H lanes
    vecs = vecs_ref[...]                         # (16, 128) packed row vectors
    wslab = wslab_ref[...]                       # (H, 8H) = [Wqkv | Wo | W1]
    masks = masks_ref[...]                       # (64, 384)

    ln1_g = vecs[_R_LN1G:_R_LN1G + 1, :H]
    ln1_b = vecs[_R_LN1B:_R_LN1B + 1, :H]
    tw = vecs[_R_TW:_R_TW + 1, :H]
    tb = vecs[_R_TB:_R_TB + 1, :H]
    bqkv = vecs[_R_BQKV:_R_BQKV + 1, :3 * H]
    bo = vecs[_R_BO:_R_BO + 1, :H]
    ln2_g = vecs[_R_LN2G:_R_LN2G + 1, :H]
    ln2_b = vecs[_R_LN2B:_R_LN2B + 1, :H]
    b1 = vecs[_R_B1:_R_B1 + 1, :4 * H]
    b2 = vecs[_R_B2:_R_B2 + 1, :H]

    # ---- LayerNorm 1 + time embedding ----
    mean = jnp.mean(x, axis=-1, keepdims=True)
    var = jnp.mean((x - mean) ** 2, axis=-1, keepdims=True)
    xn = (x - mean) * lax.rsqrt(var + EPS) * ln1_g + ln1_b
    xn = xn + t_b * tw + tb                      # time_embed(time) = t * W_t + b_t

    # ---- fused QKV projection (K pre-scaled by 1/sqrt(HD)) ----
    qkv = jnp.dot(xn, wslab[:, 0:3 * H],
                  preferred_element_type=jnp.float32) + bqkv          # (16, 96)
    q = qkv[:, 0:H]                              # (16, 32)  heads packed in lanes
    k = qkv[:, H:2 * H]
    v = qkv[:, 2 * H:3 * H]

    bigmask = masks[:, 0:NBS]                    # (64, 64) additive (0 / -1e9)
    headmask = masks[:, NBS:NBS + H]             # (64, 32) 0/1
    posmask = masks[0:BS, 128:128 + S * H]       # (16, 256) 0/1

    # ---- head-stacked layout (rows = head*BS + row): sublane tiling + head mask ----
    q_rep = jnp.concatenate([q, q, q, q], axis=0)                     # (64, 32)
    k_rep = jnp.concatenate([k, k, k, k], axis=0) * headmask          # (64, 32)
    v_rep = jnp.concatenate([v, v, v, v], axis=0) * headmask          # (64, 32)

    # scores for all heads in ONE MXU matmul (off-head/off-batch blocks masked below)
    scores = lax.dot_general(q_rep, k_rep, (((1,), (1,)), ((), ())),
                             preferred_element_type=jnp.float32)      # (64, 64)

    # relative-position scores: ONE matmul against the precomputed (256,64) table
    q_tile = jnp.concatenate([q] * S, axis=1) * posmask               # (16, 256)
    pos = jnp.dot(q_tile, relw_ref[...],
                  preferred_element_type=jnp.float32)                 # (16, 64)
    pos_rep = jnp.concatenate([pos, pos, pos, pos], axis=0)           # (64, 64)

    logits = scores + pos_rep + bigmask

    # ---- single softmax over all heads / rows ----
    m = jnp.max(logits, axis=-1, keepdims=True)
    e = jnp.exp(logits - m)
    denom = jnp.sum(e, axis=-1, keepdims=True)
    p = e * pl.reciprocal(denom, approx=True)                         # (64, 64)

    # ---- context for all heads in one matmul, folded back to (BS, H) lanes ----
    ctx_big = jnp.dot(p, v_rep, preferred_element_type=jnp.float32)   # (64, 32)
    ctx = (ctx_big[0:BS] + ctx_big[BS:2 * BS]
           + ctx_big[2 * BS:3 * BS] + ctx_big[3 * BS:4 * BS])         # (16, 32)

    # ---- out-projection + residual ----
    out = jnp.dot(ctx, wslab[:, 3 * H:4 * H],
                  preferred_element_type=jnp.float32) + bo + x        # (16, 32)

    # ---- LayerNorm 2 + FFN (tanh GELU on the EUP) ----
    mean2 = jnp.mean(out, axis=-1, keepdims=True)
    var2 = jnp.mean((out - mean2) ** 2, axis=-1, keepdims=True)
    on = (out - mean2) * lax.rsqrt(var2 + EPS) * ln2_g + ln2_b

    h1 = jnp.dot(on, wslab[:, 4 * H:8 * H],
                 preferred_element_type=jnp.float32) + b1             # (16, 128)
    cg = math.sqrt(2.0 / math.pi)
    h1 = 0.5 * h1 * (1.0 + jnp.tanh(cg * (h1 + 0.044715 * h1 * h1 * h1)))
    h2 = jnp.dot(h1, w2_ref[...],
                 preferred_element_type=jnp.float32) + b2             # (16, 32)

    o_ref[...] = h2 + out


# ------------------------- one-time constant packing ------------------------
def pack_constants(params, rel_emb):
    """Host-side packing of all data-independent kernel operands (done once)."""
    p = {key: np.asarray(v, np.float32) for key, v in params.items()}
    rel = np.asarray(rel_emb, np.float32)                    # (S, S, HD)
    scale = np.float32(1.0 / math.sqrt(HD))

    # fused QKV weight/bias; softmax scale folded into K (rel-pos uses raw q)
    w_qkv = np.concatenate([p["wq_t"], p["wk_t"] * scale, p["wv_t"]], axis=1)  # (H,3H)
    b_qkv = np.concatenate([p["bq"], p["bk"] * scale, p["bv"]], axis=1)        # (1,3H)

    # (H, 8H) weight slab: [Wqkv | Wo | W1]
    wslab = np.concatenate([w_qkv, p["wo_t"], p["w1_t"]], axis=1).astype(np.float32)

    # (16, 128) packed row vectors
    vecs = np.zeros((16, 128), np.float32)
    vecs[_R_LN1G, :H] = p["ln1_g"][0]
    vecs[_R_LN1B, :H] = p["ln1_b"][0]
    vecs[_R_TW, :H] = p["tw_t"][0]
    vecs[_R_TB, :H] = p["tb"][0]
    vecs[_R_BQKV, :3 * H] = b_qkv[0]
    vecs[_R_BO, :H] = p["bo"][0]
    vecs[_R_LN2G, :H] = p["ln2_g"][0]
    vecs[_R_LN2B, :H] = p["ln2_b"][0]
    vecs[_R_B1, :4 * H] = p["b1"][0]
    vecs[_R_B2, :H] = p["b2"][0]

    # (64, 384) mask slab: [bigmask (additive) | headmask (0/1) | posmask (0/1)]
    rows = np.arange(NBS)
    n_r = rows // BS
    qg = rows % BS
    cols = np.arange(NBS)
    n_c = cols // BS
    kg = cols % BS
    allowed = ((n_r[:, None] == n_c[None, :])
               & ((qg[:, None] // S) == (kg[None, :] // S))
               & ((kg[None, :] % S) <= (qg[:, None] % S)))
    bigmask = np.where(allowed, 0.0, NEG_INF).astype(np.float32)               # (64,64)
    headmask = (n_r[:, None] == (np.arange(H) // HD)[None, :]).astype(np.float32)  # (64,32)
    posmask = ((np.arange(S * H)[None, :] // H)
               == (np.arange(BS)[:, None] % S)).astype(np.float32)             # (16,256)

    masks = np.zeros((NBS, 3 * 128), np.float32)
    masks[:, 0:NBS] = bigmask
    masks[:, NBS:NBS + H] = headmask
    masks[0:BS, 128:128 + S * H] = posmask

    # (256, 64) relative-position table:
    # relw[qpos*H + n*HD + d, n'*BS + k_global] = (n == n') * rel[qpos, k_global % S, d]
    ridx = np.arange(S * H)
    qpos_i = ridx // H
    n_i = (ridx % H) // HD
    d_i = ridx % HD
    cidx = np.arange(NBS)
    n_j = cidx // BS
    kpos_j = (cidx % BS) % S
    relw = np.where(n_i[:, None] == n_j[None, :],
                    rel[qpos_i[:, None], kpos_j[None, :], d_i[:, None]],
                    0.0).astype(np.float32)

    return {
        "vecs": jnp.asarray(vecs),
        "wslab": jnp.asarray(wslab),
        "w2": jnp.asarray(p["w2_t"]),
        "relw": jnp.asarray(relw),
        "masks": jnp.asarray(masks),
    }


# ------------------------------- wrapper ------------------------------------
@jax.jit
def mhta_forward(x, time, packed):
    """x: (B,S,H) f32, time: (B,S,1) f32. Single grid-less pallas_call, 6 operands."""
    x2d = x.reshape(BS, H)
    t_b = jnp.broadcast_to(time.reshape(BS, 1), (BS, H))
    data = jnp.concatenate([x2d, t_b], axis=1)               # (16, 64)
    out2d = pl.pallas_call(
        mhta_kernel,
        out_shape=jax.ShapeDtypeStruct((BS, H), jnp.float32),
    )(data, packed["vecs"], packed["wslab"], packed["w2"],
      packed["relw"], packed["masks"])
    return out2d.reshape(B, S, H)


# ---------------------------- pure-JAX reference ----------------------------
def reference(x, time, p, rel_emb):
    def ln(val, g, b):
        m = val.mean(-1, keepdims=True)
        var = ((val - m) ** 2).mean(-1, keepdims=True)
        return (val - m) / jnp.sqrt(var + EPS) * g + b

    residual = x
    xn = ln(x, p["ln1_g"], p["ln1_b"])
    xn = xn + time @ p["tw_t"] + p["tb"]

    q = (xn @ p["wq_t"] + p["bq"]).reshape(B, S, NH, HD).transpose(0, 2, 1, 3)
    k = (xn @ p["wk_t"] + p["bk"]).reshape(B, S, NH, HD).transpose(0, 2, 1, 3)
    v = (xn @ p["wv_t"] + p["bv"]).reshape(B, S, NH, HD).transpose(0, 2, 1, 3)

    scores = jnp.einsum("bhid,bhjd->bhij", q, k) / math.sqrt(HD)
    pos = jnp.einsum("bhid,ijd->bhij", q, rel_emb)
    scores = scores + pos

    mask = jnp.triu(jnp.ones((S, S), dtype=bool), k=1)[None, None]
    scores = jnp.where(mask, -1e9, scores)
    attn = jax.nn.softmax(scores, axis=-1)

    ctx = jnp.einsum("bhij,bhjd->bhid", attn, v).transpose(0, 2, 1, 3).reshape(B, S, H)
    out = ctx @ p["wo_t"] + p["bo"] + residual

    res2 = out
    on = ln(out, p["ln2_g"], p["ln2_b"])
    h1 = on @ p["w1_t"] + p["b1"]
    h1 = 0.5 * h1 * (1.0 + jax.lax.erf(h1 / math.sqrt(2.0)))
    h2 = h1 @ p["w2_t"] + p["b2"]
    return h2 + res2


# --------------------------------- main --------------------------------------
if __name__ == "__main__":
    key = jax.random.PRNGKey(0)
    ks = jax.random.split(key, 16)

    def linear(kw, kb, d_in, d_out):
        w = jax.random.normal(kw, (d_out, d_in), jnp.float32) / math.sqrt(d_in)
        b = jax.random.normal(kb, (d_out,), jnp.float32) * 0.02
        return w, b

    wq, bq = linear(ks[0], ks[1], H, H)
    wk, bk = linear(ks[2], ks[3], H, H)
    wv, bv = linear(ks[4], ks[5], H, H)
    wo, bo = linear(ks[6], ks[7], H, H)
    tw, tb = linear(ks[8], ks[9], 1, H)       # time_embed: Linear(1, H)
    w1, b1 = linear(ks[10], ks[11], H, 4 * H)
    w2, b2 = linear(ks[12], ks[13], 4 * H, H)

    # pos_embed: (2*max_seq-1, head_dim), xavier_normal-like init
    pos_std = math.sqrt(2.0 / ((2 * MAX_SEQ - 1) + HD))
    pos_embed = jax.random.normal(ks[14], (2 * MAX_SEQ - 1, HD), jnp.float32) * pos_std

    params = {
        "ln1_g": jnp.ones((1, H), jnp.float32), "ln1_b": jnp.zeros((1, H), jnp.float32),
        "ln2_g": jnp.ones((1, H), jnp.float32), "ln2_b": jnp.zeros((1, H), jnp.float32),
        "tw_t": tw.T, "tb": tb.reshape(1, H),
        "wq_t": wq.T, "bq": bq.reshape(1, H),
        "wk_t": wk.T, "bk": bk.reshape(1, H),
        "wv_t": wv.T, "bv": bv.reshape(1, H),
        "wo_t": wo.T, "bo": bo.reshape(1, H),
        "w1_t": w1.T, "b1": b1.reshape(1, 4 * H),
        "w2_t": w2.T, "b2": b2.reshape(1, H),
    }

    # relative-position gather (tiny, data-independent) done in plain-JAX glue
    idx = jnp.arange(S)
    rel_idx = jnp.clip(idx[:, None] - idx[None, :] + (MAX_SEQ - 1), 0, 2 * MAX_SEQ - 2)
    rel_emb = pos_embed[rel_idx]                           # (S, S, HD)

    packed = pack_constants(params, rel_emb)               # one-time packing

    kx, kt = jax.random.split(ks[15])
    x = jax.random.normal(kx, (B, S, H), jnp.float32)
    time = jax.random.uniform(kt, (B, S, 1), jnp.float32)

    out = mhta_forward(x, time, packed)
    out = jax.block_until_ready(out)

    ref = reference(x, time, params, rel_emb)
    np.testing.assert_allclose(np.asarray(out), np.asarray(ref), rtol=2e-2, atol=2e-2)

    print("KERNEL_OK")
</pallas_src>

<mosaic_0001>
module attributes {stable_mosaic.version = 11 : i64} {
  func.func @mhta_kernel(%arg0: memref<16x64xf32, #tpu.memory_space<vmem>>, %arg1: memref<16x128xf32, #tpu.memory_space<vmem>>, %arg2: memref<32x256xf32, #tpu.memory_space<vmem>>, %arg3: memref<128x32xf32, #tpu.memory_space<vmem>>, %arg4: memref<256x64xf32, #tpu.memory_space<vmem>>, %arg5: memref<64x384xf32, #tpu.memory_space<vmem>>, %arg6: memref<16x32xf32, #tpu.memory_space<vmem>>) attributes {dimension_semantics = [], scalar_prefetch = 0 : i64, scratch_operands = 0 : i64, tpu.core_type = #tpu.core_type<tc>} {
    %c0 = arith.constant 0 : index
    %c0_0 = arith.constant 0 : index
    %0 = vector.load %arg0[%c0, %c0_0] : memref<16x64xf32, #tpu.memory_space<vmem>>, vector<16x64xf32>
    %1 = vector.extract_strided_slice %0 {offsets = [0, 0], sizes = [16, 32], strides = [1, 1]} : vector<16x64xf32> to vector<16x32xf32>
    %2 = vector.extract_strided_slice %0 {offsets = [0, 32], sizes = [16, 32], strides = [1, 1]} : vector<16x64xf32> to vector<16x32xf32>
    %c0_1 = arith.constant 0 : index
    %c0_2 = arith.constant 0 : index
    %3 = vector.load %arg1[%c0_1, %c0_2] : memref<16x128xf32, #tpu.memory_space<vmem>>, vector<16x128xf32>
    %c0_3 = arith.constant 0 : index
    %c0_4 = arith.constant 0 : index
    %4 = vector.load %arg2[%c0_3, %c0_4] : memref<32x256xf32, #tpu.memory_space<vmem>>, vector<32x256xf32>
    %c0_5 = arith.constant 0 : index
    %c0_6 = arith.constant 0 : index
    %5 = vector.load %arg5[%c0_5, %c0_6] : memref<64x384xf32, #tpu.memory_space<vmem>>, vector<64x384xf32>
    %6 = vector.extract_strided_slice %3 {offsets = [0, 0], sizes = [1, 32], strides = [1, 1]} : vector<16x128xf32> to vector<1x32xf32>
    %7 = vector.extract_strided_slice %3 {offsets = [1, 0], sizes = [1, 32], strides = [1, 1]} : vector<16x128xf32> to vector<1x32xf32>
    %8 = vector.extract_strided_slice %3 {offsets = [2, 0], sizes = [1, 32], strides = [1, 1]} : vector<16x128xf32> to vector<1x32xf32>
    %9 = vector.extract_strided_slice %3 {offsets = [3, 0], sizes = [1, 32], strides = [1, 1]} : vector<16x128xf32> to vector<1x32xf32>
    %10 = vector.extract_strided_slice %3 {offsets = [4, 0], sizes = [1, 96], strides = [1, 1]} : vector<16x128xf32> to vector<1x96xf32>
    %11 = vector.extract_strided_slice %3 {offsets = [5, 0], sizes = [1, 32], strides = [1, 1]} : vector<16x128xf32> to vector<1x32xf32>
    %12 = vector.extract_strided_slice %3 {offsets = [6, 0], sizes = [1, 32], strides = [1, 1]} : vector<16x128xf32> to vector<1x32xf32>
    %13 = vector.extract_strided_slice %3 {offsets = [7, 0], sizes = [1, 32], strides = [1, 1]} : vector<16x128xf32> to vector<1x32xf32>
    %14 = vector.extract_strided_slice %3 {offsets = [8, 0], sizes = [1, 128], strides = [1, 1]} : vector<16x128xf32> to vector<1x128xf32>
    %15 = vector.extract_strided_slice %3 {offsets = [9, 0], sizes = [1, 32], strides = [1, 1]} : vector<16x128xf32> to vector<1x32xf32>
    %cst = arith.constant dense<0.000000e+00> : vector<16xf32>
    %16 = vector.multi_reduction <add>, %1, %cst [1] : vector<16x32xf32> to vector<16xf32>
    %17 = vector.shape_cast %16 : vector<16xf32> to vector<16x1xf32>
    %cst_7 = arith.constant 3.200000e+01 : f32
    %18 = vector.broadcast %cst_7 : f32 to vector<16x1xf32>
    %19 = arith.divf %17, %18 : vector<16x1xf32>
    %20 = vector.broadcast %19 : vector<16x1xf32> to vector<16x32xf32>
    %21 = arith.subf %1, %20 : vector<16x32xf32>
    %22 = arith.mulf %21, %21 : vector<16x32xf32>
    %cst_8 = arith.constant dense<0.000000e+00> : vector<16xf32>
    %23 = vector.multi_reduction <add>, %22, %cst_8 [1] : vector<16x32xf32> to vector<16xf32>
    %24 = vector.shape_cast %23 : vector<16xf32> to vector<16x1xf32>
    %cst_9 = arith.constant 3.200000e+01 : f32
    %25 = vector.broadcast %cst_9 : f32 to vector<16x1xf32>
    %26 = arith.divf %24, %25 : vector<16x1xf32>
    %27 = vector.broadcast %19 : vector<16x1xf32> to vector<16x32xf32>
    %28 = arith.subf %1, %27 : vector<16x32xf32>
    %cst_10 = arith.constant 9.99999974E-6 : f32
    %29 = vector.broadcast %cst_10 : f32 to vector<16x1xf32>
    %30 = arith.addf %26, %29 : vector<16x1xf32>
    %31 = math.rsqrt %30 : vector<16x1xf32>
    %32 = vector.broadcast %31 : vector<16x1xf32> to vector<16x32xf32>
    %33 = arith.mulf %28, %32 : vector<16x32xf32>
    %34 = vector.broadcast %6 : vector<1x32xf32> to vector<16x32xf32>
    %35 = arith.mulf %33, %34 : vector<16x32xf32>
    %36 = vector.broadcast %7 : vector<1x32xf32> to vector<16x32xf32>
    %37 = arith.addf %35, %36 : vector<16x32xf32>
    %38 = vector.broadcast %8 : vector<1x32xf32> to vector<16x32xf32>
    %39 = arith.mulf %2, %38 : vector<16x32xf32>
    %40 = arith.addf %37, %39 : vector<16x32xf32>
    %41 = vector.broadcast %9 : vector<1x32xf32> to vector<16x32xf32>
    %42 = arith.addf %40, %41 : vector<16x32xf32>
    %43 = vector.extract_strided_slice %4 {offsets = [0, 0], sizes = [32, 96], strides = [1, 1]} : vector<32x256xf32> to vector<32x96xf32>
    %cst_11 = arith.constant dense<0.000000e+00> : vector<16x96xf32>
    %44 = tpu.matmul %42, %43, %cst_11 {dimension_numbers = #tpu.dot_dimension_numbers<[1], [0], [0], [1], [0, 0, 1, 1], [], []>} : vector<16x32xf32>, vector<32x96xf32>, vector<16x96xf32> -> vector<16x96xf32>
    %45 = vector.broadcast %10 : vector<1x96xf32> to vector<16x96xf32>
    %46 = arith.addf %44, %45 : vector<16x96xf32>
    %47 = vector.extract_strided_slice %46 {offsets = [0, 0], sizes = [16, 32], strides = [1, 1]} : vector<16x96xf32> to vector<16x32xf32>
    %48 = vector.extract_strided_slice %46 {offsets = [0, 32], sizes = [16, 32], strides = [1, 1]} : vector<16x96xf32> to vector<16x32xf32>
    %49 = vector.extract_strided_slice %46 {offsets = [0, 64], sizes = [16, 32], strides = [1, 1]} : vector<16x96xf32> to vector<16x32xf32>
    %50 = vector.extract_strided_slice %5 {offsets = [0, 0], sizes = [64, 64], strides = [1, 1]} : vector<64x384xf32> to vector<64x64xf32>
    %51 = vector.extract_strided_slice %5 {offsets = [0, 64], sizes = [64, 32], strides = [1, 1]} : vector<64x384xf32> to vector<64x32xf32>
    %52 = vector.extract_strided_slice %5 {offsets = [0, 128], sizes = [16, 256], strides = [1, 1]} : vector<64x384xf32> to vector<16x256xf32>
    %53 = tpu.concatenate %47, %47, %47, %47 in 0 : vector<16x32xf32>, vector<16x32xf32>, vector<16x32xf32>, vector<16x32xf32> -> vector<64x32xf32>
    %54 = tpu.concatenate %48, %48, %48, %48 in 0 : vector<16x32xf32>, vector<16x32xf32>, vector<16x32xf32>, vector<16x32xf32> -> vector<64x32xf32>
    %55 = arith.mulf %54, %51 : vector<64x32xf32>
    %56 = tpu.concatenate %49, %49, %49, %49 in 0 : vector<16x32xf32>, vector<16x32xf32>, vector<16x32xf32>, vector<16x32xf32> -> vector<64x32xf32>
    %57 = arith.mulf %56, %51 : vector<64x32xf32>
    %cst_12 = arith.constant dense<0.000000e+00> : vector<64x64xf32>
    %58 = tpu.matmul %53, %55, %cst_12 {dimension_numbers = #tpu.dot_dimension_numbers<[1], [1], [0], [0], [0, 0, 1, 0], [], []>} : vector<64x32xf32>, vector<64x32xf32>, vector<64x64xf32> -> vector<64x64xf32>
    %59 = tpu.concatenate %47, %47, %47, %47, %47, %47, %47, %47 in 1 : vector<16x32xf32>, vector<16x32xf32>, vector<16x32xf32>, vector<16x32xf32>, vector<16x32xf32>, vector<16x32xf32>, vector<16x32xf32>, vector<16x32xf32> -> vector<16x256xf32>
    %60 = arith.mulf %59, %52 : vector<16x256xf32>
    %c0_13 = arith.constant 0 : index
    %c0_14 = arith.constant 0 : index
    %61 = vector.load %arg4[%c0_13, %c0_14] : memref<256x64xf32, #tpu.memory_space<vmem>>, vector<256x64xf32>
    %cst_15 = arith.constant dense<0.000000e+00> : vector<16x64xf32>
    %62 = tpu.matmul %60, %61, %cst_15 {dimension_numbers = #tpu.dot_dimension_numbers<[1], [0], [0], [1], [0, 0, 1, 1], [], []>} : vector<16x256xf32>, vector<256x64xf32>, vector<16x64xf32> -> vector<16x64xf32>
    %63 = tpu.concatenate %62, %62, %62, %62 in 0 : vector<16x64xf32>, vector<16x64xf32>, vector<16x64xf32>, vector<16x64xf32> -> vector<64x64xf32>
    %64 = arith.addf %58, %63 : vector<64x64xf32>
    %65 = arith.addf %64, %50 : vector<64x64xf32>
    %cst_16 = arith.constant dense<0xFF800000> : vector<64xf32>
    %66 = vector.multi_reduction <maximumf>, %65, %cst_16 [1] : vector<64x64xf32> to vector<64xf32>
    %67 = vector.shape_cast %66 : vector<64xf32> to vector<64x1xf32>
    %68 = vector.broadcast %67 : vector<64x1xf32> to vector<64x64xf32>
    %69 = arith.subf %65, %68 : vector<64x64xf32>
    %70 = math.exp %69 : vector<64x64xf32>
    %cst_17 = arith.constant dense<0.000000e+00> : vector<64xf32>
    %71 = vector.multi_reduction <add>, %70, %cst_17 [1] : vector<64x64xf32> to vector<64xf32>
    %72 = vector.shape_cast %71 : vector<64xf32> to vector<64x1xf32>
    %73 = tpu.reciprocal %72 {approx = true} : vector<64x1xf32> -> vector<64x1xf32>
    %74 = vector.broadcast %73 : vector<64x1xf32> to vector<64x64xf32>
    %75 = arith.mulf %70, %74 : vector<64x64xf32>
    %cst_18 = arith.constant dense<0.000000e+00> : vector<64x32xf32>
    %76 = tpu.matmul %75, %57, %cst_18 {dimension_numbers = #tpu.dot_dimension_numbers<[1], [0], [0], [1], [0, 0, 1, 1], [], []>} : vector<64x64xf32>, vector<64x32xf32>, vector<64x32xf32> -> vector<64x32xf32>
    %77 = vector.extract_strided_slice %76 {offsets = [0, 0], sizes = [16, 32], strides = [1, 1]} : vector<64x32xf32> to vector<16x32xf32>
    %78 = vector.extract_strided_slice %76 {offsets = [16, 0], sizes = [16, 32], strides = [1, 1]} : vector<64x32xf32> to vector<16x32xf32>
    %79 = arith.addf %77, %78 : vector<16x32xf32>
    %80 = vector.extract_strided_slice %76 {offsets = [32, 0], sizes = [16, 32], strides = [1, 1]} : vector<64x32xf32> to vector<16x32xf32>
    %81 = arith.addf %79, %80 : vector<16x32xf32>
    %82 = vector.extract_strided_slice %76 {offsets = [48, 0], sizes = [16, 32], strides = [1, 1]} : vector<64x32xf32> to vector<16x32xf32>
    %83 = arith.addf %81, %82 : vector<16x32xf32>
    %84 = vector.extract_strided_slice %4 {offsets = [0, 96], sizes = [32, 32], strides = [1, 1]} : vector<32x256xf32> to vector<32x32xf32>
    %cst_19 = arith.constant dense<0.000000e+00> : vector<16x32xf32>
    %85 = tpu.matmul %83, %84, %cst_19 {dimension_numbers = #tpu.dot_dimension_numbers<[1], [0], [0], [1], [0, 0, 1, 1], [], []>} : vector<16x32xf32>, vector<32x32xf32>, vector<16x32xf32> -> vector<16x32xf32>
    %86 = vector.broadcast %11 : vector<1x32xf32> to vector<16x32xf32>
    %87 = arith.addf %85, %86 : vector<16x32xf32>
    %88 = arith.addf %87, %1 : vector<16x32xf32>
    %cst_20 = arith.constant dense<0.000000e+00> : vector<16xf32>
    %89 = vector.multi_reduction <add>, %88, %cst_20 [1] : vector<16x32xf32> to vector<16xf32>
    %90 = vector.shape_cast %89 : vector<16xf32> to vector<16x1xf32>
    %cst_21 = arith.constant 3.200000e+01 : f32
    %91 = vector.broadcast %cst_21 : f32 to vector<16x1xf32>
    %92 = arith.divf %90, %91 : vector<16x1xf32>
    %93 = vector.broadcast %92 : vector<16x1xf32> to vector<16x32xf32>
    %94 = arith.subf %88, %93 : vector<16x32xf32>
    %95 = arith.mulf %94, %94 : vector<16x32xf32>
    %cst_22 = arith.constant dense<0.000000e+00> : vector<16xf32>
    %96 = vector.multi_reduction <add>, %95, %cst_22 [1] : vector<16x32xf32> to vector<16xf32>
    %97 = vector.shape_cast %96 : vector<16xf32> to vector<16x1xf32>
    %cst_23 = arith.constant 3.200000e+01 : f32
    %98 = vector.broadcast %cst_23 : f32 to vector<16x1xf32>
    %99 = arith.divf %97, %98 : vector<16x1xf32>
    %100 = vector.broadcast %92 : vector<16x1xf32> to vector<16x32xf32>
    %101 = arith.subf %88, %100 : vector<16x32xf32>
    %cst_24 = arith.constant 9.99999974E-6 : f32
    %102 = vector.broadcast %cst_24 : f32 to vector<16x1xf32>
    %103 = arith.addf %99, %102 : vector<16x1xf32>
    %104 = math.rsqrt %103 : vector<16x1xf32>
    %105 = vector.broadcast %104 : vector<16x1xf32> to vector<16x32xf32>
    %106 = arith.mulf %101, %105 : vector<16x32xf32>
    %107 = vector.broadcast %12 : vector<1x32xf32> to vector<16x32xf32>
    %108 = arith.mulf %106, %107 : vector<16x32xf32>
    %109 = vector.broadcast %13 : vector<1x32xf32> to vector<16x32xf32>
    %110 = arith.addf %108, %109 : vector<16x32xf32>
    %111 = vector.extract_strided_slice %4 {offsets = [0, 128], sizes = [32, 128], strides = [1, 1]} : vector<32x256xf32> to vector<32x128xf32>
    %cst_25 = arith.constant dense<0.000000e+00> : vector<16x128xf32>
    %112 = tpu.matmul %110, %111, %cst_25 {dimension_numbers = #tpu.dot_dimension_numbers<[1], [0], [0], [1], [0, 0, 1, 1], [], []>} : vector<16x32xf32>, vector<32x128xf32>, vector<16x128xf32> -> vector<16x128xf32>
    %113 = vector.broadcast %14 : vector<1x128xf32> to vector<16x128xf32>
    %114 = arith.addf %112, %113 : vector<16x128xf32>
    %cst_26 = arith.constant 5.000000e-01 : f32
    %115 = vector.broadcast %cst_26 : f32 to vector<16x128xf32>
    %116 = arith.mulf %115, %114 : vector<16x128xf32>
    %cst_27 = arith.constant 4.471500e-02 : f32
    %117 = vector.broadcast %cst_27 : f32 to vector<16x128xf32>
    %118 = arith.mulf %117, %114 : vector<16x128xf32>
    %119 = arith.mulf %118, %114 : vector<16x128xf32>
    %120 = arith.mulf %119, %114 : vector<16x128xf32>
    %121 = arith.addf %114, %120 : vector<16x128xf32>
    %cst_28 = arith.constant 0.797884583 : f32
    %122 = vector.broadcast %cst_28 : f32 to vector<16x128xf32>
    %123 = arith.mulf %122, %121 : vector<16x128xf32>
    %124 = math.tanh %123 : vector<16x128xf32>
    %cst_29 = arith.constant 1.000000e+00 : f32
    %125 = vector.broadcast %cst_29 : f32 to vector<16x128xf32>
    %126 = arith.addf %125, %124 : vector<16x128xf32>
    %127 = arith.mulf %116, %126 : vector<16x128xf32>
    %c0_30 = arith.constant 0 : index
    %c0_31 = arith.constant 0 : index
    %128 = vector.load %arg3[%c0_30, %c0_31] : memref<128x32xf32, #tpu.memory_space<vmem>>, vector<128x32xf32>
    %cst_32 = arith.constant dense<0.000000e+00> : vector<16x32xf32>
    %129 = tpu.matmul %127, %128, %cst_32 {dimension_numbers = #tpu.dot_dimension_numbers<[1], [0], [0], [1], [0, 0, 1, 1], [], []>} : vector<16x128xf32>, vector<128x32xf32>, vector<16x32xf32> -> vector<16x32xf32>
    %130 = vector.broadcast %15 : vector<1x32xf32> to vector<16x32xf32>
    %131 = arith.addf %129, %130 : vector<16x32xf32>
    %132 = arith.addf %131, %88 : vector<16x32xf32>
    %c0_33 = arith.constant 0 : index
    %c0_34 = arith.constant 0 : index
    %133 = vector.load %arg6[%c0_33, %c0_34] : memref<16x32xf32, #tpu.memory_space<vmem>>, vector<16x32xf32>
    tpu.vector_store %arg6[%c0_33, %c0_34], %132 {strides = array<i32>} : memref<16x32xf32, #tpu.memory_space<vmem>>, vector<16x32xf32>,
    return
  }
}

</mosaic_0001>

<llo_original>
// kernel: mhta_forward.1
$region0: #{mhta_forward.1}
  #allocation0 [shape = 'u32[]', space=smem, size = 0x4, offset = 0x4, fixed_abs, tag = 'smem constant byte address 0x4 - core index']
  #allocation1 [shape = 'u32[72,128]{1,0:T(1,128)}', space=vmem, size = 0x9000, scoped, tag = 'internal scratch']
  %s0 = inlined_call_operand.vmem [shape: f32[16,64], index: 0, kind: input, shape index: {}]
  %s1 = inlined_call_operand.vmem [shape: f32[16,128], index: 1, kind: input, shape index: {}]
  %s2 = inlined_call_operand.vmem [shape: f32[32,256], index: 2, kind: input, shape index: {}]
  %s3 = inlined_call_operand.vmem [shape: f32[128,32], index: 3, kind: input, shape index: {}]
  %s4 = inlined_call_operand.vmem [shape: f32[256,64], index: 4, kind: input, shape index: {}]
  %s5 = inlined_call_operand.vmem [shape: f32[64,384], index: 5, kind: input, shape index: {}]
  %s6 = inlined_call_operand.hbm [shape: f32[16,32], index: 6, kind: output, shape index: {}]
  %s7 = sld [smem:[#allocation0]]
  $region34: #{mhta_forward.1} parent=0
    _
  %s9 = ssub.s32 1, %s7
  %s10 = scalar_select 0, %s9, %s7
  $region1: #{mhta_forward.1} parent=0
    #allocation2 [shape = 'u8[8192]{0}', space=vmem, size = 0x2000, scoped, tag = 'output window, operand 0, single buffered']
    #allocation3 [shape = 's32[1]{0}', space=sflag, size = 0x4, scoped, tag = 'scoped memory for mhta_forward.1']
    %11 = vsyncpa [#allocation3], 0
    // Predicated region
    $region2: #{mhta_forward.1} parent=1 // pred_check
      _
    $region3: #{mhta_forward.1} parent=1 // pred_check_branch
      %13 = sbr.rel (0) target = $region5
    $region4: #{mhta_forward.1} parent=1 // pred_region
      _
    $region5: #{mhta_forward.1} parent=1 // pred_fallthru
      _
    // Predicated region
    $region6: #{mhta_forward.1} parent=1 // pred_check
      _
    $region7: #{mhta_forward.1} parent=1 // pred_check_branch
      %15 = sbr.rel (0) target = $region9
    $region8: #{mhta_forward.1} parent=1 // pred_region
      _
    $region9: #{mhta_forward.1} parent=1 // pred_fallthru
      _
    // Predicated region
    $region10: #{mhta_forward.1} parent=1 // pred_check
      _
    $region11: #{mhta_forward.1} parent=1 // pred_check_branch
      %17 = sbr.rel (0) target = $region13
    $region12: #{mhta_forward.1} parent=1 // pred_region
      _
    $region13: #{mhta_forward.1} parent=1 // pred_fallthru
      _
    // Predicated region
    $region14: #{mhta_forward.1} parent=1 // pred_check
      _
    $region15: #{mhta_forward.1} parent=1 // pred_check_branch
      %19 = sbr.rel (0) target = $region17
    $region16: #{mhta_forward.1} parent=1 // pred_region
      _
    $region17: #{mhta_forward.1} parent=1 // pred_fallthru
      _
    // Predicated region
    $region18: #{mhta_forward.1} parent=1 // pred_check
      _
    $region19: #{mhta_forward.1} parent=1 // pred_check_branch
      %21 = sbr.rel (0) target = $region21
    $region20: #{mhta_forward.1} parent=1 // pred_region
      _
    $region21: #{mhta_forward.1} parent=1 // pred_fallthru
      _
    // Predicated region
    $region22: #{mhta_forward.1} parent=1 // pred_check
      _
    $region23: #{mhta_forward.1} parent=1 // pred_check_branch
      %23 = sbr.rel (0) target = $region25
    $region24: #{mhta_forward.1} parent=1 // pred_region
      _
    $region25: #{mhta_forward.1} parent=1 // pred_fallthru
      _
    %v24 = vld [vmem:[%s0] sm:$0xff]
    %v25 = vld [vmem:[%s0 + $0x8] sm:$0xff]
    %v26 = vld [vmem:[%s1] sm:$0xff]
    %v27 = vld [vmem:[%s1 + $0x8] sm:$0xff]
    %v28 = vld [vmem:[%s2] sm:$0xff]
    %v29 = vld [vmem:[%s2 + $0x8] sm:$0xff]
    %v30 = vld [vmem:[%s2 + $0x10] sm:$0xff]
    %v31 = vld [vmem:[%s2 + $0x18] sm:$0xff]
    %v32 = vld [vmem:[%s2 + $0x20] sm:$0xff]
    %v33 = vld [vmem:[%s2 + $0x28] sm:$0xff]
    %v34 = vld [vmem:[%s2 + $0x30] sm:$0xff]
    %v35 = vld [vmem:[%s2 + $0x38] sm:$0xff]
    %v36 = vld [vmem:[%s5] sm:$0xff]
    %v37 = vld [vmem:[%s5 + $0x8] sm:$0xff]
    %v38 = vld [vmem:[%s5 + $0x10] sm:$0xff]
    %v39 = vld [vmem:[%s5 + $0x18] sm:$0xff]
    %v40 = vld [vmem:[%s5 + $0x20] sm:$0xff]
    %v41 = vld [vmem:[%s5 + $0x28] sm:$0xff]
    %v42 = vld [vmem:[%s5 + $0x30] sm:$0xff]
    %v43 = vld [vmem:[%s5 + $0x48] sm:$0xff]
    %v44 = vld [vmem:[%s5 + $0x60] sm:$0xff]
    %v45 = vld [vmem:[%s5 + $0x78] sm:$0xff]
    %v46 = vld [vmem:[%s5 + $0x90] sm:$0xff]
    %v47 = vld [vmem:[%s5 + $0xa8] sm:$0xff]
    %vm48 = vcmask 261120
    %v49 = vsel %vm48, %v24, 0.0
    %50 = vadd.xlane.f32.xlu0 %v49
    %v51 = vpop.xlane.xlu0 %50
    %v52 = vsel %vm48, %v25, 0.0
    %53 = vadd.xlane.f32.xlu0 %v52
    %v54 = vpop.xlane.xlu0 %53
    %v55 = vrcp.pop 32.0
    %v56 = vmul.f32 32.0, %v55
    %v57 = vsub.f32 1.0, %v56
    %v58 = vmul.f32 %v55, %v57
    %v59 = vadd.f32 %v55, %v58
    %vm60 = vweird.f32 %v55
    %v61 = vsel %vm60, %v55, %v59
    %v62 = vmul.f32 %v51, %v61
    %v63 = vmul.f32 %v54, %v61
    %v64 = vsub.f32 %v24, %v62
    %v65 = vsub.f32 %v25, %v63
    %v66 = vmul.f32 %v64, %v64
    %v67 = vmul.f32 %v65, %v65
    %v68 = vsel %vm48, %v66, 0.0
    %69 = vadd.xlane.f32.xlu0 %v68
    %v70 = vpop.xlane.xlu0 %69
    %v71 = vsel %vm48, %v67, 0.0
    %72 = vadd.xlane.f32.xlu0 %v71
    %v73 = vpop.xlane.xlu0 %72
    %v74 = vmul.f32 %v70, %v61
    %v75 = vmul.f32 %v73, %v61
    %v76 = vadd.f32 %v74, 1e-05
    %v77 = vadd.f32 %v75, 1e-05
    %v78 = vrsqrt.pop %v76
    %v79 = vmul.f32 %v78, %v76
    %v80 = vmul.f32 %v79, %v78
    %v81 = vmul.f32 0.5, %v80
    %v82 = vsub.f32 1.5, %v81
    %v83 = vmul.f32 %v78, %v82
    %vm84 = vweird.f32 %v76
    %vm85 = vweird.f32 %v78
    %vm86 = vmor %vm84, %vm85
    %v87 = vsel %vm86, %v78, %v83
    %v88 = vrsqrt.pop %v77
    %v89 = vmul.f32 %v88, %v77
    %v90 = vmul.f32 %v89, %v88
    %v91 = vmul.f32 0.5, %v90
    %v92 = vsub.f32 1.5, %v91
    %v93 = vmul.f32 %v88, %v92
    %vm94 = vweird.f32 %v77
    %vm95 = vweird.f32 %v88
    %vm96 = vmor %vm94, %vm95
    %v97 = vsel %vm96, %v88, %v93
    %v98 = vmul.f32 %v64, %v87
    %v99 = vmul.f32 %v65, %v97
    %v100 = vperm.slane %v26, 0
    %v101 = vmul.f32 %v98, %v100
    %v102 = vmul.f32 %v99, %v100
    %v103 = vperm.slane %v26, 1
    %v104 = vadd.f32 %v101, %v103
    %v105 = vadd.f32 %v102, %v103
    %v106 = vperm.slane %v26, 2
    %108 = vrot.lane.b32.xlu0 %v106, 32
    %v109 = vpop.permute.xlu0 %108
    %v111 = vmul.f32 %v24, %v109
    %v112 = vmul.f32 %v25, %v109
    %115 = vrot.lane.b32.xlu0 %v111, 96
    %v116 = vpop.permute.xlu0 %115
    %117 = vrot.lane.b32.xlu0 %v112, 96
    %v118 = vpop.permute.xlu0 %117
    %v121 = vadd.f32 %v104, %v116
    %v122 = vadd.f32 %v105, %v118
    %v123 = vperm.slane %v26, 3
    %v124 = vadd.f32 %v121, %v123
    %v125 = vadd.f32 %v122, %v123
    %v126 = vperm.slane %v26, 4
    %v128 = vsel %vm48, %v124, 0
    %v131 = vsel %vm48, %v125, 0
    %133 = vmatpush.msra.mxu0 0.0
    %134 = vmatpush.msra.mxu0 0.0
    %135 = vmatpush.msra.mxu0 0.0
    %136 = vmatpush.msra.mxu0 0.0
    %137 = vmatpush.msra.mxu0 0.0
    %138 = vmatpush.msra.mxu0 0.0
    %139 = vmatpush.msra.mxu0 0.0
    %140 = vmatpush.msra.mxu0 0.0
    %141 = vmatpush.msra.mxu0 0.0
    %142 = vmatpush.msra.mxu0 0.0
    %143 = vmatpush.msra.mxu0 0.0
    %144 = vmatpush.msra.mxu0 0.0
    %145 = vmatpush.msra.mxu0 %v34
    %146 = vmatpush.msra.mxu0 %v32
    %147 = vmatpush.msra.mxu0 %v30
    %148 = vmatpush.msra.mxu0 %v28
    %149 = vmatmul.f32.gmra.mxu0 %v128
    %v150 = vpop.f32.mrf.mxu0
    %v151 = vadd.f32 %v126, %v150
    %152 = vmatmul.f32.gmra.mxu0 %v131
    %v153 = vpop.f32.mrf.mxu0
    %v154 = vadd.f32 %v126, %v153
    %155 = vdwg.mxu0
    %164 = vrot.lane.b32.xlu0 %v36, 96
    %v165 = vpop.permute.xlu0 %164
    %166 = vrot.lane.b32.xlu0 %v39, 96
    %v167 = vpop.permute.xlu0 %166
    %168 = vrot.lane.b32.xlu0 %v42, 96
    %v169 = vpop.permute.xlu0 %168
    %170 = vrot.lane.b32.xlu0 %v43, 96
    %v171 = vpop.permute.xlu0 %170
    %172 = vrot.lane.b32.xlu0 %v44, 96
    %v173 = vpop.permute.xlu0 %172
    %174 = vrot.lane.b32.xlu0 %v45, 96
    %v175 = vpop.permute.xlu0 %174
    %176 = vrot.lane.b32.xlu0 %v46, 96
    %v177 = vpop.permute.xlu0 %176
    %178 = vrot.lane.b32.xlu0 %v47, 96
    %v179 = vpop.permute.xlu0 %178
    %v188 = vmul.f32 %v151, %v165
    %v189 = vmul.f32 %v154, %v167
    %v190 = vmul.f32 %v151, %v169
    %v191 = vmul.f32 %v154, %v171
    %v192 = vmul.f32 %v151, %v173
    %v193 = vmul.f32 %v154, %v175
    %v194 = vmul.f32 %v151, %v177
    %v195 = vmul.f32 %v154, %v179
    %v196 = vmul.f32 %v151, %v36
    %v197 = vmul.f32 %v154, %v39
    %v198 = vmul.f32 %v151, %v42
    %v199 = vmul.f32 %v154, %v43
    %v200 = vmul.f32 %v151, %v44
    %v201 = vmul.f32 %v154, %v45
    %v202 = vmul.f32 %v151, %v46
    %v203 = vmul.f32 %v154, %v47
    %206 = vrot.lane.b32.xlu0 %v151, 32
    %v207 = vpop.permute.xlu0 %206
    %208 = vrot.lane.b32.xlu0 %v154, 32
    %v209 = vpop.permute.xlu0 %208
    %212 = vrot.lane.b32.xlu0 %v151, 64
    %v213 = vpop.permute.xlu0 %212
    %214 = vrot.lane.b32.xlu0 %v154, 64
    %v215 = vpop.permute.xlu0 %214
    %218 = vrot.lane.b32.xlu0 %v151, 96
    %v219 = vpop.permute.xlu0 %218
    %220 = vrot.lane.b32.xlu0 %v154, 96
    %v221 = vpop.permute.xlu0 %220
    %v224 = vsel %vm48, %v151, %v207
    %v225 = vsel %vm48, %v154, %v209
    %vm226 = vcmask 523264
    %v227 = vsel %vm226, %v224, %v213
    %v228 = vsel %vm226, %v225, %v215
    %vm229 = vcmask 785408
    %v230 = vsel %vm229, %v227, %v219
    %v231 = vsel %vm229, %v228, %v221
    %v232 = vmul.f32 %v230, %v37
    %v233 = vmul.f32 %v230, %v38
    %v234 = vmul.f32 %v231, %v40
    %v235 = vmul.f32 %v231, %v41
    %v236 = vld [vmem:[%s4] sm:$0xff]
    %v237 = vld [vmem:[%s4 + $0x8] sm:$0xff]
    %v238 = vld [vmem:[%s4 + $0x10] sm:$0xff]
    %v239 = vld [vmem:[%s4 + $0x18] sm:$0xff]
    %v240 = vld [vmem:[%s4 + $0x20] sm:$0xff]
    %v241 = vld [vmem:[%s4 + $0x28] sm:$0xff]
    %v242 = vld [vmem:[%s4 + $0x30] sm:$0xff]
    %v243 = vld [vmem:[%s4 + $0x38] sm:$0xff]
    %v244 = vld [vmem:[%s4 + $0x40] sm:$0xff]
    %v245 = vld [vmem:[%s4 + $0x48] sm:$0xff]
    %v246 = vld [vmem:[%s4 + $0x50] sm:$0xff]
    %v247 = vld [vmem:[%s4 + $0x58] sm:$0xff]
    %v248 = vld [vmem:[%s4 + $0x60] sm:$0xff]
    %v249 = vld [vmem:[%s4 + $0x68] sm:$0xff]
    %v250 = vld [vmem:[%s4 + $0x70] sm:$0xff]
    %v251 = vld [vmem:[%s4 + $0x78] sm:$0xff]
    %v252 = vld [vmem:[%s4 + $0x80] sm:$0xff]
    %v253 = vld [vmem:[%s4 + $0x88] sm:$0xff]
    %v254 = vld [vmem:[%s4 + $0x90] sm:$0xff]
    %v255 = vld [vmem:[%s4 + $0x98] sm:$0xff]
    %v256 = vld [vmem:[%s4 + $0xa0] sm:$0xff]
    %v257 = vld [vmem:[%s4 + $0xa8] sm:$0xff]
    %v258 = vld [vmem:[%s4 + $0xb0] sm:$0xff]
    %v259 = vld [vmem:[%s4 + $0xb8] sm:$0xff]
    %v260 = vld [vmem:[%s4 + $0xc0] sm:$0xff]
    %v261 = vld [vmem:[%s4 + $0xc8] sm:$0xff]
    %v262 = vld [vmem:[%s4 + $0xd0] sm:$0xff]
    %v263 = vld [vmem:[%s4 + $0xd8] sm:$0xff]
    %v264 = vld [vmem:[%s4 + $0xe0] sm:$0xff]
    %v265 = vld [vmem:[%s4 + $0xe8] sm:$0xff]
    %v266 = vld [vmem:[%s4 + $0xf0] sm:$0xff]
    %v267 = vld [vmem:[%s4 + $0xf8] sm:$0xff]
    %268 = vmatpush.msra.mxu0 %v251
    %269 = vmatpush.msra.mxu0 %v250
    %270 = vmatpush.msra.mxu0 %v249
    %271 = vmatpush.msra.mxu0 %v248
    %272 = vmatpush.msra.mxu0 %v247
    %273 = vmatpush.msra.mxu0 %v246
    %274 = vmatpush.msra.mxu0 %v245
    %275 = vmatpush.msra.mxu0 %v244
    %276 = vmatpush.msra.mxu0 %v243
    %277 = vmatpush.msra.mxu0 %v242
    %278 = vmatpush.msra.mxu0 %v241
    %279 = vmatpush.msra.mxu0 %v240
    %280 = vmatpush.msra.mxu0 %v239
    %281 = vmatpush.msra.mxu0 %v238
    %282 = vmatpush.msra.mxu0 %v237
    %283 = vmatpush.msra.mxu0 %v236
    %284 = vmatmul.f32.gmra.mxu0 %v232
    %v285 = vpop.f32.mrf.mxu0
    %v286 = vadd.f32 0.0, %v285
    %287 = vmatmul.f32.gmra.mxu0 %v234
    %v288 = vpop.f32.mrf.mxu0
    %v289 = vadd.f32 0.0, %v288
    %290 = vdwg.mxu0
    %291 = vmatpush.msra.mxu0 %v267
    %292 = vmatpush.msra.mxu0 %v266
    %293 = vmatpush.msra.mxu0 %v265
    %294 = vmatpush.msra.mxu0 %v264
    %295 = vmatpush.msra.mxu0 %v263
    %296 = vmatpush.msra.mxu0 %v262
    %297 = vmatpush.msra.mxu0 %v261
    %298 = vmatpush.msra.mxu0 %v260
    %299 = vmatpush.msra.mxu0 %v259
    %300 = vmatpush.msra.mxu0 %v258
    %301 = vmatpush.msra.mxu0 %v257
    %302 = vmatpush.msra.mxu0 %v256
    %303 = vmatpush.msra.mxu0 %v255
    %304 = vmatpush.msra.mxu0 %v254
    %305 = vmatpush.msra.mxu0 %v253
    %306 = vmatpush.msra.mxu0 %v252
    %307 = vmatmul.f32.gmra.mxu0 %v233
    %v308 = vpop.f32.mrf.mxu0
    %v309 = vadd.f32 %v286, %v308
    %310 = vmatmul.f32.gmra.mxu0 %v235
    %v311 = vpop.f32.mrf.mxu0
    %v312 = vadd.f32 %v289, %v311
    %313 = vdwg.mxu0
    %322 = vrot.lane.b32.xlu0 %v188, 96
    %v323 = vpop.permute.xlu0 %322
    %324 = vrot.lane.b32.xlu0 %v189, 96
    %v325 = vpop.permute.xlu0 %324
    %326 = vrot.lane.b32.xlu0 %v190, 96
    %v327 = vpop.permute.xlu0 %326
    %328 = vrot.lane.b32.xlu0 %v191, 96
    %v329 = vpop.permute.xlu0 %328
    %330 = vrot.lane.b32.xlu0 %v192, 96
    %v331 = vpop.permute.xlu0 %330
    %332 = vrot.lane.b32.xlu0 %v193, 96
    %v333 = vpop.permute.xlu0 %332
    %334 = vrot.lane.b32.xlu0 %v194, 96
    %v335 = vpop.permute.xlu0 %334
    %336 = vrot.lane.b32.xlu0 %v195, 96
    %v337 = vpop.permute.xlu0 %336
    %v338 = vsel %vm48, %v151, 0
    %v340 = vsel %vm48, %v154, 0
    %v342 = vsel %vm48, %v323, 0
    %v344 = vsel %vm48, %v325, 0
    %v346 = vsel %vm48, %v327, 0
    %v348 = vsel %vm48, %v329, 0
    %v350 = vsel %vm48, %v331, 0
    %v352 = vsel %vm48, %v333, 0
    %v354 = vsel %vm48, %v335, 0
    %v356 = vsel %vm48, %v337, 0
    %358 = vmatpush.xpose.msra.mxu0 0.0
    %359 = vmatpush.xpose.msra.mxu0 0.0
    %360 = vmatpush.xpose.msra.mxu0 0.0
    %361 = vmatpush.xpose.msra.mxu0 0.0
    %362 = vmatpush.xpose.msra.mxu0 0.0
    %363 = vmatpush.xpose.msra.mxu0 0.0
    %364 = vmatpush.xpose.msra.mxu0 0.0
    %365 = vmatpush.xpose.msra.mxu0 0.0
    %366 = vmatpush.xpose.msra.mxu0 %v356
    %367 = vmatpush.xpose.msra.mxu0 %v354
    %368 = vmatpush.xpose.msra.mxu0 %v352
    %369 = vmatpush.xpose.msra.mxu0 %v350
    %370 = vmatpush.xpose.msra.mxu0 %v348
    %371 = vmatpush.xpose.msra.mxu0 %v346
    %372 = vmatpush.xpose.msra.mxu0 %v344
    %373 = vmatpush.xpose.msra.mxu0 %v342
    %374 = vmatmul.f32.gmra.mxu0 %v338
    %v375 = vpop.f32.mrf.mxu0
    %v376 = vadd.f32 %v309, %v375
    %377 = vmatmul.f32.gmra.mxu0 %v340
    %v378 = vpop.f32.mrf.mxu0
    %v379 = vadd.f32 %v312, %v378
    %380 = vmatmul.f32.gmra.mxu0 %v338
    %v381 = vpop.f32.mrf.mxu0
    %v382 = vadd.f32 %v309, %v381
    %383 = vmatmul.f32.gmra.mxu0 %v340
    %v384 = vpop.f32.mrf.mxu0
    %v385 = vadd.f32 %v312, %v384
    %386 = vmatmul.f32.gmra.mxu0 %v338
    %v387 = vpop.f32.mrf.mxu0
    %v388 = vadd.f32 %v309, %v387
    %389 = vmatmul.f32.gmra.mxu0 %v340
    %v390 = vpop.f32.mrf.mxu0
    %v391 = vadd.f32 %v312, %v390
    %392 = vmatmul.f32.gmra.mxu0 %v338
    %v393 = vpop.f32.mrf.mxu0
    %v394 = vadd.f32 %v309, %v393
    %395 = vmatmul.f32.gmra.mxu0 %v340
    %v396 = vpop.f32.mrf.mxu0
    %v397 = vadd.f32 %v312, %v396
    %398 = vdwg.mxu0
    %v399 = vadd.f32 %v376, %v36
    %v400 = vadd.f32 %v379, %v39
    %v401 = vadd.f32 %v382, %v42
    %v402 = vadd.f32 %v385, %v43
    %v403 = vadd.f32 %v388, %v44
    %v404 = vadd.f32 %v391, %v45
    %v405 = vadd.f32 %v394, %v46
    %v406 = vadd.f32 %v397, %v47
    %v407 = vsel %vm226, %v399, -inf
    %408 = vmax.xlane.f32.xlu0 %v407
    %v409 = vpop.xlane.xlu0 %408
    %v410 = vsel %vm226, %v400, -inf
    %411 = vmax.xlane.f32.xlu0 %v410
    %v412 = vpop.xlane.xlu0 %411
    %v413 = vsel %vm226, %v401, -inf
    %414 = vmax.xlane.f32.xlu0 %v413
    %v415 = vpop.xlane.xlu0 %414
    %v416 = vsel %vm226, %v402, -inf
    %417 = vmax.xlane.f32.xlu0 %v416
    %v418 = vpop.xlane.xlu0 %417
    %v419 = vsel %vm226, %v403, -inf
    %420 = vmax.xlane.f32.xlu0 %v419
    %v421 = vpop.xlane.xlu0 %420
    %v422 = vsel %vm226, %v404, -inf
    %423 = vmax.xlane.f32.xlu0 %v422
    %v424 = vpop.xlane.xlu0 %423
    %v425 = vsel %vm226, %v405, -inf
    %426 = vmax.xlane.f32.xlu0 %v425
    %v427 = vpop.xlane.xlu0 %426
    %v428 = vsel %vm226, %v406, -inf
    %429 = vmax.xlane.f32.xlu0 %v428
    %v430 = vpop.xlane.xlu0 %429
    %v431 = vsub.f32 %v399, %v409
    %v432 = vsub.f32 %v400, %v412
    %v433 = vsub.f32 %v401, %v415
    %v434 = vsub.f32 %v402, %v418
    %v435 = vsub.f32 %v403, %v421
    %v436 = vsub.f32 %v404, %v424
    %v437 = vsub.f32 %v405, %v427
    %v438 = vsub.f32 %v406, %v430
    %v439 = vmul.f32 %v431, 1.442695
    %v440 = vpow.pop %v439
    %v441 = vmul.f32 %v432, 1.442695
    %v442 = vpow.pop %v441
    %v443 = vmul.f32 %v433, 1.442695
    %v444 = vpow.pop %v443
    %v445 = vmul.f32 %v434, 1.442695
    %v446 = vpow.pop %v445
    %v447 = vmul.f32 %v435, 1.442695
    %v448 = vpow.pop %v447
    %v449 = vmul.f32 %v436, 1.442695
    %v450 = vpow.pop %v449
    %v451 = vmul.f32 %v437, 1.442695
    %v452 = vpow.pop %v451
    %v453 = vmul.f32 %v438, 1.442695
    %v454 = vpow.pop %v453
    %v455 = vsel %vm226, %v440, 0.0
    %456 = vadd.xlane.f32.xlu0 %v455
    %v457 = vpop.xlane.xlu0 %456
    %v458 = vsel %vm226, %v442, 0.0
    %459 = vadd.xlane.f32.xlu0 %v458
    %v460 = vpop.xlane.xlu0 %459
    %v461 = vsel %vm226, %v444, 0.0
    %462 = vadd.xlane.f32.xlu0 %v461
    %v463 = vpop.xlane.xlu0 %462
    %v464 = vsel %vm226, %v446, 0.0
    %465 = vadd.xlane.f32.xlu0 %v464
    %v466 = vpop.xlane.xlu0 %465
    %v467 = vsel %vm226, %v448, 0.0
    %468 = vadd.xlane.f32.xlu0 %v467
    %v469 = vpop.xlane.xlu0 %468
    %v470 = vsel %vm226, %v450, 0.0
    %471 = vadd.xlane.f32.xlu0 %v470
    %v472 = vpop.xlane.xlu0 %471
    %v473 = vsel %vm226, %v452, 0.0
    %474 = vadd.xlane.f32.xlu0 %v473
    %v475 = vpop.xlane.xlu0 %474
    %v476 = vsel %vm226, %v454, 0.0
    %477 = vadd.xlane.f32.xlu0 %v476
    %v478 = vpop.xlane.xlu0 %477
    %v479 = vrcp.pop %v457
    %v480 = vrcp.pop %v460
    %v481 = vrcp.pop %v463
    %v482 = vrcp.pop %v466
    %v483 = vrcp.pop %v469
    %v484 = vrcp.pop %v472
    %v485 = vrcp.pop %v475
    %v486 = vrcp.pop %v478
    %v487 = vmul.f32 %v440, %v479
    %v488 = vmul.f32 %v442, %v480
    %v489 = vmul.f32 %v444, %v481
    %v490 = vmul.f32 %v446, %v482
    %v491 = vmul.f32 %v448, %v483
    %v492 = vmul.f32 %v450, %v484
    %v493 = vmul.f32 %v452, %v485
    %v494 = vmul.f32 %v454, %v486
    %503 = vrot.lane.b32.xlu0 %v196, 64
    %v504 = vpop.permute.xlu0 %503
    %505 = vrot.lane.b32.xlu0 %v197, 64
    %v506 = vpop.permute.xlu0 %505
    %507 = vrot.lane.b32.xlu0 %v198, 64
    %v508 = vpop.permute.xlu0 %507
    %509 = vrot.lane.b32.xlu0 %v199, 64
    %v510 = vpop.permute.xlu0 %509
    %511 = vrot.lane.b32.xlu0 %v200, 64
    %v512 = vpop.permute.xlu0 %511
    %513 = vrot.lane.b32.xlu0 %v201, 64
    %v514 = vpop.permute.xlu0 %513
    %515 = vrot.lane.b32.xlu0 %v202, 64
    %v516 = vpop.permute.xlu0 %515
    %517 = vrot.lane.b32.xlu0 %v203, 64
    %v518 = vpop.permute.xlu0 %517
    %v528 = vsel %vm226, %v487, 0
    %v531 = vsel %vm226, %v488, 0
    %v534 = vsel %vm226, %v489, 0
    %v537 = vsel %vm226, %v490, 0
    %v540 = vsel %vm226, %v491, 0
    %v543 = vsel %vm226, %v492, 0
    %v546 = vsel %vm226, %v493, 0
    %v549 = vsel %vm226, %v494, 0
    %551 = vmatpush.msra.mxu0 0.0
    %552 = vmatpush.msra.mxu0 0.0
    %553 = vmatpush.msra.mxu0 0.0
    %554 = vmatpush.msra.mxu0 0.0
    %555 = vmatpush.msra.mxu0 0.0
    %556 = vmatpush.msra.mxu0 0.0
    %557 = vmatpush.msra.mxu0 0.0
    %558 = vmatpush.msra.mxu0 0.0
    %559 = vmatpush.msra.mxu0 %v518
    %560 = vmatpush.msra.mxu0 %v516
    %561 = vmatpush.msra.mxu0 %v514
    %562 = vmatpush.msra.mxu0 %v512
    %563 = vmatpush.msra.mxu0 %v510
    %564 = vmatpush.msra.mxu0 %v508
    %565 = vmatpush.msra.mxu0 %v506
    %566 = vmatpush.msra.mxu0 %v504
    %567 = vmatmul.f32.gmra.mxu0 %v528
    %v568 = vpop.f32.mrf.mxu0
    %v569 = vadd.f32 0.0, %v568
    %570 = vmatmul.f32.gmra.mxu0 %v531
    %v571 = vpop.f32.mrf.mxu0
    %v572 = vadd.f32 0.0, %v571
    %573 = vmatmul.f32.gmra.mxu0 %v534
    %v574 = vpop.f32.mrf.mxu0
    %v575 = vadd.f32 0.0, %v574
    %576 = vmatmul.f32.gmra.mxu0 %v537
    %v577 = vpop.f32.mrf.mxu0
    %v578 = vadd.f32 0.0, %v577
    %579 = vmatmul.f32.gmra.mxu0 %v540
    %v580 = vpop.f32.mrf.mxu0
    %v581 = vadd.f32 0.0, %v580
    %582 = vmatmul.f32.gmra.mxu0 %v543
    %v583 = vpop.f32.mrf.mxu0
    %v584 = vadd.f32 0.0, %v583
    %585 = vmatmul.f32.gmra.mxu0 %v546
    %v586 = vpop.f32.mrf.mxu0
    %v587 = vadd.f32 0.0, %v586
    %588 = vmatmul.f32.gmra.mxu0 %v549
    %v589 = vpop.f32.mrf.mxu0
    %v590 = vadd.f32 0.0, %v589
    %591 = vdwg.mxu0
    %v592 = vadd.f32 %v569, %v575
    %v593 = vadd.f32 %v572, %v578
    %v594 = vadd.f32 %v592, %v581
    %v595 = vadd.f32 %v593, %v584
    %v596 = vadd.f32 %v594, %v587
    %v597 = vadd.f32 %v595, %v590
    %v598 = vperm.slane %v26, 5
    %603 = vrot.lane.b32.xlu0 %v28, 32
    %v604 = vpop.permute.xlu0 %603
    %605 = vrot.lane.b32.xlu0 %v30, 32
    %v606 = vpop.permute.xlu0 %605
    %607 = vrot.lane.b32.xlu0 %v32, 32
    %v608 = vpop.permute.xlu0 %607
    %609 = vrot.lane.b32.xlu0 %v34, 32
    %v610 = vpop.permute.xlu0 %609
    %v616 = vsel %vm48, %v596, 0
    %v619 = vsel %vm48, %v597, 0
    %621 = vmatpush.msra.mxu0 0.0
    %622 = vmatpush.msra.mxu0 0.0
    %623 = vmatpush.msra.mxu0 0.0
    %624 = vmatpush.msra.mxu0 0.0
    %625 = vmatpush.msra.mxu0 0.0
    %626 = vmatpush.msra.mxu0 0.0
    %627 = vmatpush.msra.mxu0 0.0
    %628 = vmatpush.msra.mxu0 0.0
    %629 = vmatpush.msra.mxu0 0.0
    %630 = vmatpush.msra.mxu0 0.0
    %631 = vmatpush.msra.mxu0 0.0
    %632 = vmatpush.msra.mxu0 0.0
    %633 = vmatpush.msra.mxu0 %v610
    %634 = vmatpush.msra.mxu0 %v608
    %635 = vmatpush.msra.mxu0 %v606
    %636 = vmatpush.msra.mxu0 %v604
    %637 = vmatmul.f32.gmra.mxu0 %v616
    %v638 = vpop.f32.mrf.mxu0
    %v639 = vadd.f32 %v598, %v638
    %640 = vmatmul.f32.gmra.mxu0 %v619
    %v641 = vpop.f32.mrf.mxu0
    %v642 = vadd.f32 %v598, %v641
    %643 = vdwg.mxu0
    %v644 = vadd.f32 %v639, %v24
    %v645 = vadd.f32 %v642, %v25
    %v646 = vsel %vm48, %v644, 0.0
    %647 = vadd.xlane.f32.xlu0 %v646
    %v648 = vpop.xlane.xlu0 %647
    %v649 = vsel %vm48, %v645, 0.0
    %650 = vadd.xlane.f32.xlu0 %v649
    %v651 = vpop.xlane.xlu0 %650
    %v652 = vmul.f32 %v648, %v61
    %v653 = vmul.f32 %v651, %v61
    %v654 = vsub.f32 %v644, %v652
    %v655 = vsub.f32 %v645, %v653
    %v656 = vmul.f32 %v654, %v654
    %v657 = vmul.f32 %v655, %v655
    %v658 = vsel %vm48, %v656, 0.0
    %659 = vadd.xlane.f32.xlu0 %v658
    %v660 = vpop.xlane.xlu0 %659
    %v661 = vsel %vm48, %v657, 0.0
    %662 = vadd.xlane.f32.xlu0 %v661
    %v663 = vpop.xlane.xlu0 %662
    %v664 = vmul.f32 %v660, %v61
    %v665 = vmul.f32 %v663, %v61
    %v666 = vadd.f32 %v664, 1e-05
    %v667 = vadd.f32 %v665, 1e-05
    %v668 = vrsqrt.pop %v666
    %v669 = vmul.f32 %v668, %v666
    %v670 = vmul.f32 %v669, %v668
    %v671 = vmul.f32 0.5, %v670
    %v672 = vsub.f32 1.5, %v671
    %v673 = vmul.f32 %v668, %v672
    %vm674 = vweird.f32 %v666
    %vm675 = vweird.f32 %v668
    %vm676 = vmor %vm674, %vm675
    %v677 = vsel %vm676, %v668, %v673
    %v678 = vrsqrt.pop %v667
    %v679 = vmul.f32 %v678, %v667
    %v680 = vmul.f32 %v679, %v678
    %v681 = vmul.f32 0.5, %v680
    %v682 = vsub.f32 1.5, %v681
    %v683 = vmul.f32 %v678, %v682
    %vm684 = vweird.f32 %v667
    %vm685 = vweird.f32 %v678
    %vm686 = vmor %vm684, %vm685
    %v687 = vsel %vm686, %v678, %v683
    %v688 = vmul.f32 %v654, %v677
    %v689 = vmul.f32 %v655, %v687
    %v690 = vperm.slane %v26, 6
    %v691 = vmul.f32 %v688, %v690
    %v692 = vmul.f32 %v689, %v690
    %v693 = vperm.slane %v26, 7
    %v694 = vadd.f32 %v691, %v693
    %v695 = vadd.f32 %v692, %v693
    %v696 = vperm.slane %v27, 0
    %v698 = vsel %vm48, %v694, 0
    %v701 = vsel %vm48, %v695, 0
    %703 = vmatpush.msra.mxu0 0.0
    %704 = vmatpush.msra.mxu0 0.0
    %705 = vmatpush.msra.mxu0 0.0
    %706 = vmatpush.msra.mxu0 0.0
    %707 = vmatpush.msra.mxu0 0.0
    %708 = vmatpush.msra.mxu0 0.0
    %709 = vmatpush.msra.mxu0 0.0
    %710 = vmatpush.msra.mxu0 0.0
    %711 = vmatpush.msra.mxu0 0.0
    %712 = vmatpush.msra.mxu0 0.0
    %713 = vmatpush.msra.mxu0 0.0
    %714 = vmatpush.msra.mxu0 0.0
    %715 = vmatpush.msra.mxu0 %v35
    %716 = vmatpush.msra.mxu0 %v33
    %717 = vmatpush.msra.mxu0 %v31
    %718 = vmatpush.msra.mxu0 %v29
    %719 = vmatmul.f32.gmra.mxu0 %v698
    %v720 = vpop.f32.mrf.mxu0
    %v721 = vadd.f32 %v696, %v720
    %722 = vmatmul.f32.gmra.mxu0 %v701
    %v723 = vpop.f32.mrf.mxu0
    %v724 = vadd.f32 %v696, %v723
    %725 = vdwg.mxu0
    %v726 = vmul.f32 %v721, 0.5
    %v727 = vmul.f32 %v724, 0.5
    %v728 = vmul.f32 %v721, 0.044715
    %v729 = vmul.f32 %v724, 0.044715
    %v730 = vmul.f32 %v728, %v721
    %v731 = vmul.f32 %v729, %v724
    %v732 = vmul.f32 %v730, %v721
    %v733 = vmul.f32 %v731, %v724
    %v734 = vadd.f32 %v721, %v732
    %v735 = vadd.f32 %v724, %v733
    %v736 = vmul.f32 %v734, 0.7978846
    %v737 = vmul.f32 %v735, 0.7978846
    %v738 = vtanh.pop %v736
    %v739 = vtanh.pop %v737
    %v740 = vadd.f32 %v738, 1.0
    %v741 = vadd.f32 %v739, 1.0
    %v742 = vmul.f32 %v726, %v740
    %v743 = vmul.f32 %v727, %v741
    %v744 = vld [vmem:[%s3] sm:$0xff]
    %v745 = vld [vmem:[%s3 + $0x8] sm:$0xff]
    %v746 = vld [vmem:[%s3 + $0x10] sm:$0xff]
    %v747 = vld [vmem:[%s3 + $0x18] sm:$0xff]
    %v748 = vld [vmem:[%s3 + $0x20] sm:$0xff]
    %v749 = vld [vmem:[%s3 + $0x28] sm:$0xff]
    %v750 = vld [vmem:[%s3 + $0x30] sm:$0xff]
    %v751 = vld [vmem:[%s3 + $0x38] sm:$0xff]
    %v752 = vld [vmem:[%s3 + $0x40] sm:$0xff]
    %v753 = vld [vmem:[%s3 + $0x48] sm:$0xff]
    %v754 = vld [vmem:[%s3 + $0x50] sm:$0xff]
    %v755 = vld [vmem:[%s3 + $0x58] sm:$0xff]
    %v756 = vld [vmem:[%s3 + $0x60] sm:$0xff]
    %v757 = vld [vmem:[%s3 + $0x68] sm:$0xff]
    %v758 = vld [vmem:[%s3 + $0x70] sm:$0xff]
    %v759 = vld [vmem:[%s3 + $0x78] sm:$0xff]
    %v760 = vperm.slane %v27, 1
    %761 = vmatpush.msra.mxu0 %v759
    %762 = vmatpush.msra.mxu0 %v758
    %763 = vmatpush.msra.mxu0 %v757
    %764 = vmatpush.msra.mxu0 %v756
    %765 = vmatpush.msra.mxu0 %v755
    %766 = vmatpush.msra.mxu0 %v754
    %767 = vmatpush.msra.mxu0 %v753
    %768 = vmatpush.msra.mxu0 %v752
    %769 = vmatpush.msra.mxu0 %v751
    %770 = vmatpush.msra.mxu0 %v750
    %771 = vmatpush.msra.mxu0 %v749
    %772 = vmatpush.msra.mxu0 %v748
    %773 = vmatpush.msra.mxu0 %v747
    %774 = vmatpush.msra.mxu0 %v746
    %775 = vmatpush.msra.mxu0 %v745
    %776 = vmatpush.msra.mxu0 %v744
    %777 = vmatmul.f32.gmra.mxu0 %v742
    %v778 = vpop.f32.mrf.mxu0
    %v779 = vadd.f32 %v760, %v778
    %780 = vmatmul.f32.gmra.mxu0 %v743
    %v781 = vpop.f32.mrf.mxu0
    %v782 = vadd.f32 %v760, %v781
    %783 = vdwg.mxu0
    %v784 = vadd.f32 %v779, %v644
    %v785 = vadd.f32 %v782, %v645
    %786 = vst.msk [vmem:[#allocation2] sm:$0xff] %vm48, %v784
    %787 = vst.msk [vmem:[#allocation2 + $0x8] sm:$0xff] %vm48, %v785
    // Predicated region
    $region26: #{mhta_forward.1} parent=1 // pred_check
      _
    $region27: #{mhta_forward.1} parent=1 // pred_check_branch
      %789 = sbr.rel (0) target = $region29
    $region28: #{mhta_forward.1} parent=1 // pred_region
      %791 = vsyncadd [#allocation3], 0
      %s792 = sshll.u32 [#allocation2], 4
      %s793 = int_to_ptr.vmem [resolvable:$true] %s792
      %s794 = sshll.u32 %s6, 4
      %s795 = int_to_ptr.hbm [resolvable:$true] %s794
      %800 = dma.vmem_to_hbm [thread:$0]  %s793, 256, %s795, [#allocation3], 128, 128, 8
    $region29: #{mhta_forward.1} parent=1 // pred_fallthru
      _
    // Predicated region
    $region30: #{mhta_forward.1} parent=1 // pred_check
      _
    $region31: #{mhta_forward.1} parent=1 // pred_check_branch
      %802 = sbr.rel (0) target = $region33
    $region32: #{mhta_forward.1} parent=1 // pred_region
      %804 = dma.done [#allocation3], 256
    $region33: #{mhta_forward.1} parent=1 // pred_fallthru
      _
    %805 = vsyncpa [#allocation3], 1

</llo_original>
